<compile_context>
chip_gen: v7x
topology: tpu7x:2x2x1
jax: 0.10.0
libtpu: 0.0.40
codegen_flags: <defaults>
</compile_context>

<pallas_src>
import jax
import jax.numpy as jnp
import numpy as np
from jax import lax
from jax.experimental import pallas as pl
from jax.experimental.pallas import tpu as pltpu


def _lstm_kernel(x_ref, wih_ref, whh_ref, b_ref, h0_ref, c0_ref,
                 out_ref, hn_ref, cn_ref, xproj_ref):
    # x_ref:   (T_CHUNK*B, I)  bf16     (this chunk's timesteps, flattened)
    # wih_ref: (I, 4H) bf16 ; whh_ref: (H, 4H) f32 ; b_ref: (1, 4H) f32
    # out_ref: (T_CHUNK, B, H) f32 ; hn_ref/cn_ref: (B, H) f32 (resident carries)
    # xproj_ref: (T_CHUNK*B, 4H) f32 VMEM scratch
    TC, B, H = out_ref.shape

    # Initialize the resident h/c carries from h0/c0 on the first chunk only.
    @pl.when(pl.program_id(0) == 0)
    def _():
        hn_ref[...] = h0_ref[...]
        cn_ref[...] = c0_ref[...]

    # Hoisted per-chunk input projection: one (TC*B, I) @ (I, 4H) MXU call,
    # bf16 operands / f32 accumulation, bias folded in.  Stored to VMEM scratch
    # so only per-step (B, 4H) slices stay live inside the recurrence.
    xproj_ref[...] = jnp.dot(x_ref[...], wih_ref[...],
                             preferred_element_type=jnp.float32) + b_ref[...]

    whh = whh_ref[...]          # (H, 4H) f32 — hoisted out of the loop
    h0 = hn_ref[...]            # (B, H) f32
    c0 = cn_ref[...]            # (B, H) f32

    def step(t, carry):
        h, c = carry
        row = pl.multiple_of(t * B, B)          # sublane-aligned slice start
        gates = xproj_ref[pl.ds(row, B), :] + jnp.dot(
            h, whh, preferred_element_type=jnp.float32)      # (B, 4H) f32

        # One full-width sigmoid over the lane-dense (B, 4H) vreg, then slice;
        # tanh only on the g-gate quarter (PyTorch gate order [i, f, g, o]).
        sg = jax.nn.sigmoid(gates)
        i_g = sg[:, 0 * H:1 * H]
        f_g = sg[:, 1 * H:2 * H]
        o_g = sg[:, 3 * H:4 * H]
        g_g = jnp.tanh(gates[:, 2 * H:3 * H])

        c_new = f_g * c + i_g * g_g
        h_new = o_g * jnp.tanh(c_new)
        out_ref[t] = h_new                      # VMEM store; chunk DMA'd back
        return (h_new, c_new)                   # by the pipeline after step TC-1

    h, c = lax.fori_loop(0, TC, step, (h0, c0), unroll=True)

    hn_ref[...] = h     # resident carries persist into the next grid step and
    cn_ref[...] = c     # are written back to HBM after the final chunk


def encoder_rnn_forward(x, h0, c0, w_ih, w_hh, b_ih, b_hh, t_chunk=None):
    """x: (T, B, I) f32; h0/c0: (1, B, H) f32; PyTorch-layout weights
    w_ih: (4H, I), w_hh: (4H, H), b_ih/b_hh: (4H,).
    Returns (output (T,B,H) f32, (h_n (1,B,H), c_n (1,B,H)))."""
    T, B, I = x.shape
    H = w_hh.shape[1]
    G = 4 * H

    if t_chunk is None:
        # Small default chunk so the x-in / out-writeback DMAs pipeline behind
        # the serial recurrence.  (Re-derive vs. VMEM for production T/B/H.)
        t_chunk = next(c for c in (4, 8, 2, 1) if T % c == 0)
    n_chunks = T // t_chunk

    # Weight prep (wrapper side): transpose so the kernel does x @ W^T directly,
    # fold the two biases.  x / W_ih^T in bf16 (f32 accumulation); the recurrent
    # path (h, W_hh^T) stays f32 so no rounding feeds back through the recurrence.
    wih_t = w_ih.T.astype(jnp.bfloat16)                       # (I, 4H)
    whh_t = w_hh.T.astype(jnp.float32)                        # (H, 4H)
    bias = (b_ih + b_hh).reshape(1, G).astype(jnp.float32)    # (1, 4H)
    x2d = x.reshape(T * B, I).astype(jnp.bfloat16)            # (T*B, I)
    h0_2d = h0.reshape(B, H).astype(jnp.float32)
    c0_2d = c0.reshape(B, H).astype(jnp.float32)

    # Explicit VMEM budget: double-buffered x / out chunks, pinned weights,
    # carries, xproj scratch — with headroom (capped well under v7x's 64 MiB).
    vmem_est = (2 * t_chunk * B * I * 2      # x chunk (bf16) x2 buffers
                + 2 * t_chunk * B * H * 4    # out chunk (f32) x2 buffers
                + I * G * 2 + H * G * 4 + G * 4   # pinned weights + bias
                + 4 * B * H * 4              # h0, c0, h_n, c_n
                + t_chunk * B * G * 4)       # xproj scratch
    vmem_limit = int(min(max(4 * vmem_est, 4 << 20), 64 << 20))

    out, hn, cn = pl.pallas_call(
        _lstm_kernel,
        out_shape=(
            jax.ShapeDtypeStruct((T, B, H), jnp.float32),
            jax.ShapeDtypeStruct((B, H), jnp.float32),
            jax.ShapeDtypeStruct((B, H), jnp.float32),
        ),
        grid=(n_chunks,),
        in_specs=[
            pl.BlockSpec((t_chunk * B, I), lambda t: (t, 0)),   # x chunk
            pl.BlockSpec((I, G), lambda t: (0, 0)),             # W_ih^T (pinned)
            pl.BlockSpec((H, G), lambda t: (0, 0)),             # W_hh^T (pinned)
            pl.BlockSpec((1, G), lambda t: (0, 0)),             # folded bias
            pl.BlockSpec((B, H), lambda t: (0, 0)),             # h0 (pinned)
            pl.BlockSpec((B, H), lambda t: (0, 0)),             # c0 (pinned)
        ],
        out_specs=(
            pl.BlockSpec((t_chunk, B, H), lambda t: (t, 0, 0)), # out chunk
            pl.BlockSpec((B, H), lambda t: (0, 0)),             # h_n (resident carry)
            pl.BlockSpec((B, H), lambda t: (0, 0)),             # c_n (resident carry)
        ),
        scratch_shapes=[pltpu.VMEM((t_chunk * B, G), jnp.float32)],  # xproj
        compiler_params=pltpu.CompilerParams(
            dimension_semantics=("arbitrary",),
            vmem_limit_bytes=vmem_limit),
    )(x2d, wih_t, whh_t, bias, h0_2d, c0_2d)

    return out, (hn.reshape(1, B, H), cn.reshape(1, B, H))


def _reference_lstm(x, h0, c0, w_ih, w_hh, b_ih, b_hh):
    """Pure-JAX f32 reference (PyTorch nn.LSTM semantics)."""
    H = w_hh.shape[1]
    b = (b_ih + b_hh)

    def step(carry, x_t):
        h, c = carry
        gates = x_t @ w_ih.T + h @ w_hh.T + b
        i = jax.nn.sigmoid(gates[:, 0 * H:1 * H])
        f = jax.nn.sigmoid(gates[:, 1 * H:2 * H])
        g = jnp.tanh(gates[:, 2 * H:3 * H])
        o = jax.nn.sigmoid(gates[:, 3 * H:4 * H])
        c_new = f * c + i * g
        h_new = o * jnp.tanh(c_new)
        return (h_new, c_new), h_new

    (h_n, c_n), ys = jax.lax.scan(step, (h0[0], c0[0]), x)
    return ys, (h_n[None], c_n[None])


if __name__ == "__main__":
    # Small shapes consistent with the module's forward:
    # seq=8, batch=8, input_size (EMBEDDING_DIM)=32, hidden=32.
    T, B, I, H = 8, 8, 32, 32
    key = jax.random.PRNGKey(0)
    k_x, k_wi, k_wh, k_bi, k_bh = jax.random.split(key, 5)

    # PyTorch-style uniform(-1/sqrt(H), 1/sqrt(H)) init.
    bound = 1.0 / np.sqrt(H)
    w_ih = jax.random.uniform(k_wi, (4 * H, I), jnp.float32, -bound, bound)
    w_hh = jax.random.uniform(k_wh, (4 * H, H), jnp.float32, -bound, bound)
    b_ih = jax.random.uniform(k_bi, (4 * H,), jnp.float32, -bound, bound)
    b_hh = jax.random.uniform(k_bh, (4 * H,), jnp.float32, -bound, bound)

    x = jax.random.normal(k_x, (T, B, I), jnp.float32)
    # initHidden(): zeros of shape (1, batch, hidden)
    h0 = jnp.zeros((1, B, H), jnp.float32)
    c0 = jnp.zeros((1, B, H), jnp.float32)

    out, (h_n, c_n) = encoder_rnn_forward(x, h0, c0, w_ih, w_hh, b_ih, b_hh)
    jax.block_until_ready((out, h_n, c_n))

    # Correctness vs. pure-f32 reference; tolerance covers the bf16 operands
    # of the hoisted input projection (recurrent path and gate math are f32).
    out_ref, (h_ref, c_ref) = _reference_lstm(x, h0, c0, w_ih, w_hh, b_ih, b_hh)
    np.testing.assert_allclose(np.asarray(out), np.asarray(out_ref),
                               rtol=2e-2, atol=2e-2)
    np.testing.assert_allclose(np.asarray(h_n), np.asarray(h_ref),
                               rtol=2e-2, atol=2e-2)
    np.testing.assert_allclose(np.asarray(c_n), np.asarray(c_ref),
                               rtol=2e-2, atol=2e-2)

    print("KERNEL_OK")
</pallas_src>

<mosaic_0001>
module attributes {stable_mosaic.version = 11 : i64} {
  func.func @_lstm_kernel(%arg0: i32, %arg1: memref<32x32xbf16, #tpu.memory_space<vmem>>, %arg2: memref<32x128xbf16, #tpu.memory_space<vmem>>, %arg3: memref<32x128xf32, #tpu.memory_space<vmem>>, %arg4: memref<1x128xf32, #tpu.memory_space<vmem>>, %arg5: memref<8x32xf32, #tpu.memory_space<vmem>>, %arg6: memref<8x32xf32, #tpu.memory_space<vmem>>, %arg7: memref<4x8x32xf32, #tpu.memory_space<vmem>>, %arg8: memref<8x32xf32, #tpu.memory_space<vmem>>, %arg9: memref<8x32xf32, #tpu.memory_space<vmem>>, %arg10: memref<32x128xf32, #tpu.memory_space<vmem>>) attributes {dimension_semantics = [#tpu.dimension_semantics<arbitrary>], iteration_bounds = array<i64: 2>, scalar_prefetch = 0 : i64, scratch_operands = 1 : i64, tpu.core_type = #tpu.core_type<tc>, window_params = [{transform_indices = @transform_0, window_bounds = array<i64: 32, 32>}, {pipeline_mode = #tpu.pipeline_mode<synchronous>, transform_indices = @transform_1, window_bounds = array<i64: 32, 128>}, {pipeline_mode = #tpu.pipeline_mode<synchronous>, transform_indices = @transform_2, window_bounds = array<i64: 32, 128>}, {pipeline_mode = #tpu.pipeline_mode<synchronous>, transform_indices = @transform_3, window_bounds = array<i64: 1, 128>}, {pipeline_mode = #tpu.pipeline_mode<synchronous>, transform_indices = @transform_4, window_bounds = array<i64: 8, 32>}, {pipeline_mode = #tpu.pipeline_mode<synchronous>, transform_indices = @transform_5, window_bounds = array<i64: 8, 32>}, {transform_indices = @transform_6, window_bounds = array<i64: 4, 8, 32>}, {pipeline_mode = #tpu.pipeline_mode<synchronous>, transform_indices = @transform_7, window_bounds = array<i64: 8, 32>}, {pipeline_mode = #tpu.pipeline_mode<synchronous>, transform_indices = @transform_8, window_bounds = array<i64: 8, 32>}]} {
    %c0_i32 = arith.constant 0 : i32
    %0 = arith.cmpi eq, %arg0, %c0_i32 : i32
    %1 = arith.extui %0 : i1 to i32
    %c0_i32_0 = arith.constant 0 : i32
    %2 = arith.cmpi ne, %1, %c0_i32_0 : i32
    scf.if %2 {
      %c0_42 = arith.constant 0 : index
      %c0_43 = arith.constant 0 : index
      %115 = vector.load %arg5[%c0_42, %c0_43] : memref<8x32xf32, #tpu.memory_space<vmem>>, vector<8x32xf32>
      %c0_44 = arith.constant 0 : index
      %c0_45 = arith.constant 0 : index
      %116 = vector.load %arg8[%c0_44, %c0_45] : memref<8x32xf32, #tpu.memory_space<vmem>>, vector<8x32xf32>
      tpu.vector_store %arg8[%c0_44, %c0_45], %115 {strides = array<i32>} : memref<8x32xf32, #tpu.memory_space<vmem>>, vector<8x32xf32>,
      %c0_46 = arith.constant 0 : index
      %c0_47 = arith.constant 0 : index
      %117 = vector.load %arg6[%c0_46, %c0_47] : memref<8x32xf32, #tpu.memory_space<vmem>>, vector<8x32xf32>
      %c0_48 = arith.constant 0 : index
      %c0_49 = arith.constant 0 : index
      %118 = vector.load %arg9[%c0_48, %c0_49] : memref<8x32xf32, #tpu.memory_space<vmem>>, vector<8x32xf32>
      tpu.vector_store %arg9[%c0_48, %c0_49], %117 {strides = array<i32>} : memref<8x32xf32, #tpu.memory_space<vmem>>, vector<8x32xf32>,
    } else {
    }
    %c0 = arith.constant 0 : index
    %c0_1 = arith.constant 0 : index
    %3 = vector.load %arg1[%c0, %c0_1] : memref<32x32xbf16, #tpu.memory_space<vmem>>, vector<32x32xbf16>
    %c0_2 = arith.constant 0 : index
    %c0_3 = arith.constant 0 : index
    %4 = vector.load %arg2[%c0_2, %c0_3] : memref<32x128xbf16, #tpu.memory_space<vmem>>, vector<32x128xbf16>
    %cst = arith.constant dense<0.000000e+00> : vector<32x128xf32>
    %5 = tpu.matmul %3, %4, %cst {dimension_numbers = #tpu.dot_dimension_numbers<[1], [0], [0], [1], [0, 0, 1, 1], [], []>} : vector<32x32xbf16>, vector<32x128xbf16>, vector<32x128xf32> -> vector<32x128xf32>
    %c0_4 = arith.constant 0 : index
    %c0_5 = arith.constant 0 : index
    %6 = vector.load %arg4[%c0_4, %c0_5] : memref<1x128xf32, #tpu.memory_space<vmem>>, vector<1x128xf32>
    %7 = vector.broadcast %6 : vector<1x128xf32> to vector<32x128xf32>
    %8 = arith.addf %5, %7 : vector<32x128xf32>
    %c0_6 = arith.constant 0 : index
    %c0_7 = arith.constant 0 : index
    %9 = vector.load %arg10[%c0_6, %c0_7] : memref<32x128xf32, #tpu.memory_space<vmem>>, vector<32x128xf32>
    tpu.vector_store %arg10[%c0_6, %c0_7], %8 {strides = array<i32>} : memref<32x128xf32, #tpu.memory_space<vmem>>, vector<32x128xf32>,
    %c0_8 = arith.constant 0 : index
    %c0_9 = arith.constant 0 : index
    %10 = vector.load %arg3[%c0_8, %c0_9] : memref<32x128xf32, #tpu.memory_space<vmem>>, vector<32x128xf32>
    %c0_10 = arith.constant 0 : index
    %c0_11 = arith.constant 0 : index
    %11 = vector.load %arg8[%c0_10, %c0_11] : memref<8x32xf32, #tpu.memory_space<vmem>>, vector<8x32xf32>
    %c0_12 = arith.constant 0 : index
    %c0_13 = arith.constant 0 : index
    %12 = vector.load %arg9[%c0_12, %c0_13] : memref<8x32xf32, #tpu.memory_space<vmem>>, vector<8x32xf32>
    %c0_i32_14 = arith.constant 0 : i32
    %c8_i32 = arith.constant 8 : i32
    %13 = arith.muli %c0_i32_14, %c8_i32 : i32
    %14 = tpu.assume_multiple %13, 8 : i32
    %15 = arith.index_cast %14 : i32 to index
    %c0_15 = arith.constant 0 : index
    %16 = vector.load %arg10[%15, %c0_15] : memref<32x128xf32, #tpu.memory_space<vmem>>, vector<8x128xf32>
    %cst_16 = arith.constant dense<0.000000e+00> : vector<8x128xf32>
    %17 = tpu.matmul %11, %10, %cst_16 {dimension_numbers = #tpu.dot_dimension_numbers<[1], [0], [0], [1], [0, 0, 1, 1], [], []>} : vector<8x32xf32>, vector<32x128xf32>, vector<8x128xf32> -> vector<8x128xf32>
    %18 = arith.addf %16, %17 : vector<8x128xf32>
    %19 = arith.negf %18 : vector<8x128xf32>
    %20 = math.exp %19 : vector<8x128xf32>
    %cst_17 = arith.constant 1.000000e+00 : f32
    %21 = vector.broadcast %cst_17 : f32 to vector<8x128xf32>
    %22 = arith.addf %21, %20 : vector<8x128xf32>
    %23 = arith.divf %21, %22 : vector<8x128xf32>
    %24 = vector.extract_strided_slice %23 {offsets = [0, 0], sizes = [8, 32], strides = [1, 1]} : vector<8x128xf32> to vector<8x32xf32>
    %25 = vector.extract_strided_slice %23 {offsets = [0, 32], sizes = [8, 32], strides = [1, 1]} : vector<8x128xf32> to vector<8x32xf32>
    %26 = vector.extract_strided_slice %23 {offsets = [0, 96], sizes = [8, 32], strides = [1, 1]} : vector<8x128xf32> to vector<8x32xf32>
    %27 = vector.extract_strided_slice %18 {offsets = [0, 64], sizes = [8, 32], strides = [1, 1]} : vector<8x128xf32> to vector<8x32xf32>
    %28 = math.tanh %27 : vector<8x32xf32>
    %29 = arith.mulf %25, %12 : vector<8x32xf32>
    %30 = arith.mulf %24, %28 : vector<8x32xf32>
    %31 = arith.addf %29, %30 : vector<8x32xf32>
    %32 = math.tanh %31 : vector<8x32xf32>
    %33 = arith.mulf %26, %32 : vector<8x32xf32>
    %34 = arith.index_cast %c0_i32_14 : i32 to index
    %c0_18 = arith.constant 0 : index
    %c0_19 = arith.constant 0 : index
    %35 = vector.load %arg7[%34, %c0_18, %c0_19] : memref<4x8x32xf32, #tpu.memory_space<vmem>>, vector<1x8x32xf32>
    %36 = vector.shape_cast %35 : vector<1x8x32xf32> to vector<8x32xf32>
    %37 = vector.shape_cast %33 : vector<8x32xf32> to vector<1x8x32xf32>
    tpu.vector_store %arg7[%34, %c0_18, %c0_19], %37 {strides = array<i32>} : memref<4x8x32xf32, #tpu.memory_space<vmem>>, vector<1x8x32xf32>,
    %c1_i32 = arith.constant 1 : i32
    %c8_i32_20 = arith.constant 8 : i32
    %38 = arith.muli %c1_i32, %c8_i32_20 : i32
    %39 = tpu.assume_multiple %38, 8 : i32
    %40 = arith.index_cast %39 : i32 to index
    %c0_21 = arith.constant 0 : index
    %41 = vector.load %arg10[%40, %c0_21] : memref<32x128xf32, #tpu.memory_space<vmem>>, vector<8x128xf32>
    %cst_22 = arith.constant dense<0.000000e+00> : vector<8x128xf32>
    %42 = tpu.matmul %33, %10, %cst_22 {dimension_numbers = #tpu.dot_dimension_numbers<[1], [0], [0], [1], [0, 0, 1, 1], [], []>} : vector<8x32xf32>, vector<32x128xf32>, vector<8x128xf32> -> vector<8x128xf32>
    %43 = arith.addf %41, %42 : vector<8x128xf32>
    %44 = arith.negf %43 : vector<8x128xf32>
    %45 = math.exp %44 : vector<8x128xf32>
    %cst_23 = arith.constant 1.000000e+00 : f32
    %46 = vector.broadcast %cst_23 : f32 to vector<8x128xf32>
    %47 = arith.addf %46, %45 : vector<8x128xf32>
    %48 = arith.divf %46, %47 : vector<8x128xf32>
    %49 = vector.extract_strided_slice %48 {offsets = [0, 0], sizes = [8, 32], strides = [1, 1]} : vector<8x128xf32> to vector<8x32xf32>
    %50 = vector.extract_strided_slice %48 {offsets = [0, 32], sizes = [8, 32], strides = [1, 1]} : vector<8x128xf32> to vector<8x32xf32>
    %51 = vector.extract_strided_slice %48 {offsets = [0, 96], sizes = [8, 32], strides = [1, 1]} : vector<8x128xf32> to vector<8x32xf32>
    %52 = vector.extract_strided_slice %43 {offsets = [0, 64], sizes = [8, 32], strides = [1, 1]} : vector<8x128xf32> to vector<8x32xf32>
    %53 = math.tanh %52 : vector<8x32xf32>
    %54 = arith.mulf %50, %31 : vector<8x32xf32>
    %55 = arith.mulf %49, %53 : vector<8x32xf32>
    %56 = arith.addf %54, %55 : vector<8x32xf32>
    %57 = math.tanh %56 : vector<8x32xf32>
    %58 = arith.mulf %51, %57 : vector<8x32xf32>
    %59 = arith.index_cast %c1_i32 : i32 to index
    %c0_24 = arith.constant 0 : index
    %c0_25 = arith.constant 0 : index
    %60 = vector.load %arg7[%59, %c0_24, %c0_25] : memref<4x8x32xf32, #tpu.memory_space<vmem>>, vector<1x8x32xf32>
    %61 = vector.shape_cast %60 : vector<1x8x32xf32> to vector<8x32xf32>
    %62 = vector.shape_cast %58 : vector<8x32xf32> to vector<1x8x32xf32>
    tpu.vector_store %arg7[%59, %c0_24, %c0_25], %62 {strides = array<i32>} : memref<4x8x32xf32, #tpu.memory_space<vmem>>, vector<1x8x32xf32>,
    %c2_i32 = arith.constant 2 : i32
    %c8_i32_26 = arith.constant 8 : i32
    %63 = arith.muli %c2_i32, %c8_i32_26 : i32
    %64 = tpu.assume_multiple %63, 8 : i32
    %65 = arith.index_cast %64 : i32 to index
    %c0_27 = arith.constant 0 : index
    %66 = vector.load %arg10[%65, %c0_27] : memref<32x128xf32, #tpu.memory_space<vmem>>, vector<8x128xf32>
    %cst_28 = arith.constant dense<0.000000e+00> : vector<8x128xf32>
    %67 = tpu.matmul %58, %10, %cst_28 {dimension_numbers = #tpu.dot_dimension_numbers<[1], [0], [0], [1], [0, 0, 1, 1], [], []>} : vector<8x32xf32>, vector<32x128xf32>, vector<8x128xf32> -> vector<8x128xf32>
    %68 = arith.addf %66, %67 : vector<8x128xf32>
    %69 = arith.negf %68 : vector<8x128xf32>
    %70 = math.exp %69 : vector<8x128xf32>
    %cst_29 = arith.constant 1.000000e+00 : f32
    %71 = vector.broadcast %cst_29 : f32 to vector<8x128xf32>
    %72 = arith.addf %71, %70 : vector<8x128xf32>
    %73 = arith.divf %71, %72 : vector<8x128xf32>
    %74 = vector.extract_strided_slice %73 {offsets = [0, 0], sizes = [8, 32], strides = [1, 1]} : vector<8x128xf32> to vector<8x32xf32>
    %75 = vector.extract_strided_slice %73 {offsets = [0, 32], sizes = [8, 32], strides = [1, 1]} : vector<8x128xf32> to vector<8x32xf32>
    %76 = vector.extract_strided_slice %73 {offsets = [0, 96], sizes = [8, 32], strides = [1, 1]} : vector<8x128xf32> to vector<8x32xf32>
    %77 = vector.extract_strided_slice %68 {offsets = [0, 64], sizes = [8, 32], strides = [1, 1]} : vector<8x128xf32> to vector<8x32xf32>
    %78 = math.tanh %77 : vector<8x32xf32>
    %79 = arith.mulf %75, %56 : vector<8x32xf32>
    %80 = arith.mulf %74, %78 : vector<8x32xf32>
    %81 = arith.addf %79, %80 : vector<8x32xf32>
    %82 = math.tanh %81 : vector<8x32xf32>
    %83 = arith.mulf %76, %82 : vector<8x32xf32>
    %84 = arith.index_cast %c2_i32 : i32 to index
    %c0_30 = arith.constant 0 : index
    %c0_31 = arith.constant 0 : index
    %85 = vector.load %arg7[%84, %c0_30, %c0_31] : memref<4x8x32xf32, #tpu.memory_space<vmem>>, vector<1x8x32xf32>
    %86 = vector.shape_cast %85 : vector<1x8x32xf32> to vector<8x32xf32>
    %87 = vector.shape_cast %83 : vector<8x32xf32> to vector<1x8x32xf32>
    tpu.vector_store %arg7[%84, %c0_30, %c0_31], %87 {strides = array<i32>} : memref<4x8x32xf32, #tpu.memory_space<vmem>>, vector<1x8x32xf32>,
    %c3_i32 = arith.constant 3 : i32
    %c8_i32_32 = arith.constant 8 : i32
    %88 = arith.muli %c3_i32, %c8_i32_32 : i32
    %89 = tpu.assume_multiple %88, 8 : i32
    %90 = arith.index_cast %89 : i32 to index
    %c0_33 = arith.constant 0 : index
    %91 = vector.load %arg10[%90, %c0_33] : memref<32x128xf32, #tpu.memory_space<vmem>>, vector<8x128xf32>
    %cst_34 = arith.constant dense<0.000000e+00> : vector<8x128xf32>
    %92 = tpu.matmul %83, %10, %cst_34 {dimension_numbers = #tpu.dot_dimension_numbers<[1], [0], [0], [1], [0, 0, 1, 1], [], []>} : vector<8x32xf32>, vector<32x128xf32>, vector<8x128xf32> -> vector<8x128xf32>
    %93 = arith.addf %91, %92 : vector<8x128xf32>
    %94 = arith.negf %93 : vector<8x128xf32>
    %95 = math.exp %94 : vector<8x128xf32>
    %cst_35 = arith.constant 1.000000e+00 : f32
    %96 = vector.broadcast %cst_35 : f32 to vector<8x128xf32>
    %97 = arith.addf %96, %95 : vector<8x128xf32>
    %98 = arith.divf %96, %97 : vector<8x128xf32>
    %99 = vector.extract_strided_slice %98 {offsets = [0, 0], sizes = [8, 32], strides = [1, 1]} : vector<8x128xf32> to vector<8x32xf32>
    %100 = vector.extract_strided_slice %98 {offsets = [0, 32], sizes = [8, 32], strides = [1, 1]} : vector<8x128xf32> to vector<8x32xf32>
    %101 = vector.extract_strided_slice %98 {offsets = [0, 96], sizes = [8, 32], strides = [1, 1]} : vector<8x128xf32> to vector<8x32xf32>
    %102 = vector.extract_strided_slice %93 {offsets = [0, 64], sizes = [8, 32], strides = [1, 1]} : vector<8x128xf32> to vector<8x32xf32>
    %103 = math.tanh %102 : vector<8x32xf32>
    %104 = arith.mulf %100, %81 : vector<8x32xf32>
    %105 = arith.mulf %99, %103 : vector<8x32xf32>
    %106 = arith.addf %104, %105 : vector<8x32xf32>
    %107 = math.tanh %106 : vector<8x32xf32>
    %108 = arith.mulf %101, %107 : vector<8x32xf32>
    %109 = arith.index_cast %c3_i32 : i32 to index
    %c0_36 = arith.constant 0 : index
    %c0_37 = arith.constant 0 : index
    %110 = vector.load %arg7[%109, %c0_36, %c0_37] : memref<4x8x32xf32, #tpu.memory_space<vmem>>, vector<1x8x32xf32>
    %111 = vector.shape_cast %110 : vector<1x8x32xf32> to vector<8x32xf32>
    %112 = vector.shape_cast %108 : vector<8x32xf32> to vector<1x8x32xf32>
    tpu.vector_store %arg7[%109, %c0_36, %c0_37], %112 {strides = array<i32>} : memref<4x8x32xf32, #tpu.memory_space<vmem>>, vector<1x8x32xf32>,
    %c4_i32 = arith.constant 4 : i32
    %c0_38 = arith.constant 0 : index
    %c0_39 = arith.constant 0 : index
    %113 = vector.load %arg8[%c0_38, %c0_39] : memref<8x32xf32, #tpu.memory_space<vmem>>, vector<8x32xf32>
    tpu.vector_store %arg8[%c0_38, %c0_39], %108 {strides = array<i32>} : memref<8x32xf32, #tpu.memory_space<vmem>>, vector<8x32xf32>,
    %c0_40 = arith.constant 0 : index
    %c0_41 = arith.constant 0 : index
    %114 = vector.load %arg9[%c0_40, %c0_41] : memref<8x32xf32, #tpu.memory_space<vmem>>, vector<8x32xf32>
    tpu.vector_store %arg9[%c0_40, %c0_41], %106 {strides = array<i32>} : memref<8x32xf32, #tpu.memory_space<vmem>>, vector<8x32xf32>,
    return
  }
  func.func @transform_0(%arg0: i32) -> (i32, i32) {
    %c0_i32 = arith.constant 0 : i32
    %c0_i32_0 = arith.constant 0 : i32
    return %arg0, %c0_i32 : i32, i32
  }
  func.func @transform_1(%arg0: i32) -> (i32, i32) {
    %c0_i32 = arith.constant 0 : i32
    %c0_i32_0 = arith.constant 0 : i32
    %c0_i32_1 = arith.constant 0 : i32
    return %c0_i32, %c0_i32_0 : i32, i32
  }
  func.func @transform_2(%arg0: i32) -> (i32, i32) {
    %c0_i32 = arith.constant 0 : i32
    %c0_i32_0 = arith.constant 0 : i32
    %c0_i32_1 = arith.constant 0 : i32
    return %c0_i32, %c0_i32_0 : i32, i32
  }
  func.func @transform_3(%arg0: i32) -> (i32, i32) {
    %c0_i32 = arith.constant 0 : i32
    %c0_i32_0 = arith.constant 0 : i32
    %c0_i32_1 = arith.constant 0 : i32
    return %c0_i32, %c0_i32_0 : i32, i32
  }
  func.func @transform_4(%arg0: i32) -> (i32, i32) {
    %c0_i32 = arith.constant 0 : i32
    %c0_i32_0 = arith.constant 0 : i32
    %c0_i32_1 = arith.constant 0 : i32
    return %c0_i32, %c0_i32_0 : i32, i32
  }
  func.func @transform_5(%arg0: i32) -> (i32, i32) {
    %c0_i32 = arith.constant 0 : i32
    %c0_i32_0 = arith.constant 0 : i32
    %c0_i32_1 = arith.constant 0 : i32
    return %c0_i32, %c0_i32_0 : i32, i32
  }
  func.func @transform_6(%arg0: i32) -> (i32, i32, i32) {
    %c0_i32 = arith.constant 0 : i32
    %c0_i32_0 = arith.constant 0 : i32
    %c0_i32_1 = arith.constant 0 : i32
    return %arg0, %c0_i32, %c0_i32_0 : i32, i32, i32
  }
  func.func @transform_7(%arg0: i32) -> (i32, i32) {
    %c0_i32 = arith.constant 0 : i32
    %c0_i32_0 = arith.constant 0 : i32
    %c0_i32_1 = arith.constant 0 : i32
    return %c0_i32, %c0_i32_0 : i32, i32
  }
  func.func @transform_8(%arg0: i32) -> (i32, i32) {
    %c0_i32 = arith.constant 0 : i32
    %c0_i32_0 = arith.constant 0 : i32
    %c0_i32_1 = arith.constant 0 : i32
    return %c0_i32, %c0_i32_0 : i32, i32
  }
}

</mosaic_0001>

<llo_original>
// kernel: tpu_custom_call.1
$region0: #{tpu_custom_call.1}
  #allocation0 [shape = 'u32[]', space=smem, size = 0x4, offset = 0x4, fixed_abs, tag = 'smem constant byte address 0x4 - core index']
  #allocation1 [shape = 'u32[144,128]{1,0:T(1,128)}', space=vmem, size = 0x12000, scoped, tag = 'internal scratch']
  #allocation2 [shape = 'f32[32,128]{1,0:T(8,128)}', space=vmem, size = 0x4000, scoped, tag = 'scratch operand']
  %s0 = inlined_call_operand.vmem [shape: bf16[64,32], index: 0, kind: input, shape index: {}]
  %s1 = inlined_call_operand.vmem [shape: bf16[32,128], index: 1, kind: input, shape index: {}]
  %s2 = inlined_call_operand.vmem [shape: f32[32,128], index: 2, kind: input, shape index: {}]
  %s3 = inlined_call_operand.vmem [shape: f32[1,128], index: 3, kind: input, shape index: {}]
  %s4 = inlined_call_operand.vmem [shape: f32[8,32], index: 4, kind: input, shape index: {}]
  %s5 = inlined_call_operand.vmem [shape: f32[8,32], index: 5, kind: input, shape index: {}]
  %s6 = inlined_call_operand.hbm [shape: f32[8,8,32], index: 6, kind: output, shape index: {0}]
  %s7 = inlined_call_operand.hbm [shape: f32[8,32], index: 7, kind: output, shape index: {1}]
  %s8 = inlined_call_operand.hbm [shape: f32[8,32], index: 8, kind: output, shape index: {2}]
  %9 = xla_tuple %s6, %s7, %s8
  %s10 = sld [smem:[#allocation0]]
  $region77: #{tpu_custom_call.1} parent=0
    _
  %s12 = ssub.s32 1, %s10
  %s13 = scalar_select 0, %s12, %s10
  $region1: #{tpu_custom_call.1} parent=0
    #allocation3 [shape = 'u8[32768]{0}', space=vmem, size = 0x8000, scoped, tag = 'output window, operand 0']
    #allocation4 [shape = 's32[2]{0}', space=sflag, size = 0x8, scoped, tag = 'scoped memory for tpu_custom_call.1']
    #allocation5 [shape = 'u8[4096]{0}', space=vmem, size = 0x1000, scoped, tag = 'output window, operand 1, single buffered']
    #allocation6 [shape = 's32[1]{0}', space=sflag, size = 0x4, scoped, tag = 'scoped memory for tpu_custom_call.1']
    #allocation7 [shape = 'u8[4096]{0}', space=vmem, size = 0x1000, scoped, tag = 'output window, operand 2, single buffered']
    %14 = vsyncpa [#allocation4], 0
    %s15 = scalar_lea.sflag [#allocation4], 1
    %16 = vsyncpa %s15, 0
    %17 = vsyncpa [#allocation6], 0
    loop: start=0, step=1, limit=4
    $region2: #{tpu_custom_call.1} parent=1 // loop_pre_header
      _
    $region3: #{tpu_custom_call.1} parent=1 // loop_header
      %s19 = sphi 0, %s23
      %p20 = scmp.ge.s32.totalorder %s19, 4
      %s29 = sphi 0, %s31
      %s32 = sphi 0, %s29
      %s33 = sphi 0, %s32
      %s49 = sphi 0, %s33
      %s53 = sphi 0, %s53
      %s55 = sphi 0, %s53
      %s56 = sphi 0, %s55
      %s70 = sphi 0, %s56
      %s74 = sphi 0, %s74
      %s76 = sphi 0, %s74
      %s77 = sphi 0, %s76
      %s91 = sphi 0, %s77
      %s95 = sphi 0, %s95
      %s97 = sphi 0, %s95
      %s98 = sphi 0, %s97
      %s112 = sphi 0, %s98
      %s116 = sphi 0, %s116
      %s118 = sphi 0, %s116
      %s119 = sphi 0, %s118
      %s133 = sphi 0, %s119
      %s137 = sphi 0, %s137
      %s139 = sphi 0, %s137
      %s140 = sphi 0, %s139
      %s154 = sphi 0, %s140
      %s160 = sphi 0, %s162
      %s163 = sphi 0, %s160
      %s164 = sphi 0, %s163
      %s180 = sphi 0, %s164
      %s184 = sphi 0, %s184
      %s186 = sphi 0, %s184
      %s187 = sphi 0, %s186
      %s201 = sphi 0, %s187
      %s205 = sphi 0, %s205
      %s207 = sphi 0, %s205
      %s208 = sphi 0, %s207
      %s222 = sphi 0, %s208
    $region4: #{tpu_custom_call.1} parent=1 // loop_header_branch
      %22 = sbr.rel (%p20) target = $region8
    $region5: #{tpu_custom_call.1} parent=1 // loop_body
      %s24 = ssub.s32 %s19, 1
      %s25 = ssub.s32 %s19, 2
      %s26 = sadd.s32 %s19, 1
      %s27 = ssub.s32 %s19, %s26
      %p28 = scmp.eq.s32.totalorder %s27, 0
      %s30 = sadd.s32 %s29, 1
      %s31 = scalar_select %p28, %s29, %s30
      %p34 = pneg %p28
      %p35 = scmp.eq.s32.totalorder %s19, 1
      %p36 = por %p34, %p35
      %p37 = scmp.ne.s32.totalorder %s29, %s32
      %p38 = scmp.eq.s32.totalorder %s19, 0
      %p39 = por %p37, %p38
      %p40 = scmp.ne.s32.totalorder %s29, %s32
      %p41 = scmp.eq.s32.totalorder %s24, 1
      %p42 = por %p40, %p41
      %p43 = scmp.ne.s32.totalorder %s32, %s33
      %p44 = scmp.eq.s32.totalorder %s24, 0
      %p45 = por %p43, %p44
      %p46 = scmp.ne.s32.totalorder %s32, %s33
      %p47 = scmp.eq.s32.totalorder %s25, 1
      %p48 = por %p46, %p47
      %p50 = scmp.ne.s32.totalorder %s33, %s49
      %p51 = scmp.eq.s32.totalorder %s25, 0
      %p52 = por %p50, %p51
      %s54 = sadd.s32 %s53, 1
      %p57 = scmp.eq.s32.totalorder %s19, 1
      %p58 = scmp.ne.s32.totalorder %s53, %s55
      %p59 = scmp.eq.s32.totalorder %s19, 0
      %p60 = por %p58, %p59
      %p61 = scmp.ne.s32.totalorder %s53, %s55
      %p62 = scmp.eq.s32.totalorder %s24, 1
      %p63 = por %p61, %p62
      %p64 = scmp.ne.s32.totalorder %s55, %s56
      %p65 = scmp.eq.s32.totalorder %s24, 0
      %p66 = por %p64, %p65
      %p67 = scmp.ne.s32.totalorder %s55, %s56
      %p68 = scmp.eq.s32.totalorder %s25, 1
      %p69 = por %p67, %p68
      %p71 = scmp.ne.s32.totalorder %s56, %s70
      %p72 = scmp.eq.s32.totalorder %s25, 0
      %p73 = por %p71, %p72
      %s75 = sadd.s32 %s74, 1
      %p78 = scmp.eq.s32.totalorder %s19, 1
      %p79 = scmp.ne.s32.totalorder %s74, %s76
      %p80 = scmp.eq.s32.totalorder %s19, 0
      %p81 = por %p79, %p80
      %p82 = scmp.ne.s32.totalorder %s74, %s76
      %p83 = scmp.eq.s32.totalorder %s24, 1
      %p84 = por %p82, %p83
      %p85 = scmp.ne.s32.totalorder %s76, %s77
      %p86 = scmp.eq.s32.totalorder %s24, 0
      %p87 = por %p85, %p86
      %p88 = scmp.ne.s32.totalorder %s76, %s77
      %p89 = scmp.eq.s32.totalorder %s25, 1
      %p90 = por %p88, %p89
      %p92 = scmp.ne.s32.totalorder %s77, %s91
      %p93 = scmp.eq.s32.totalorder %s25, 0
      %p94 = por %p92, %p93
      %s96 = sadd.s32 %s95, 1
      %p99 = scmp.eq.s32.totalorder %s19, 1
      %p100 = scmp.ne.s32.totalorder %s95, %s97
      %p101 = scmp.eq.s32.totalorder %s19, 0
      %p102 = por %p100, %p101
      %p103 = scmp.ne.s32.totalorder %s95, %s97
      %p104 = scmp.eq.s32.totalorder %s24, 1
      %p105 = por %p103, %p104
      %p106 = scmp.ne.s32.totalorder %s97, %s98
      %p107 = scmp.eq.s32.totalorder %s24, 0
      %p108 = por %p106, %p107
      %p109 = scmp.ne.s32.totalorder %s97, %s98
      %p110 = scmp.eq.s32.totalorder %s25, 1
      %p111 = por %p109, %p110
      %p113 = scmp.ne.s32.totalorder %s98, %s112
      %p114 = scmp.eq.s32.totalorder %s25, 0
      %p115 = por %p113, %p114
      %s117 = sadd.s32 %s116, 1
      %p120 = scmp.eq.s32.totalorder %s19, 1
      %p121 = scmp.ne.s32.totalorder %s116, %s118
      %p122 = scmp.eq.s32.totalorder %s19, 0
      %p123 = por %p121, %p122
      %p124 = scmp.ne.s32.totalorder %s116, %s118
      %p125 = scmp.eq.s32.totalorder %s24, 1
      %p126 = por %p124, %p125
      %p127 = scmp.ne.s32.totalorder %s118, %s119
      %p128 = scmp.eq.s32.totalorder %s24, 0
      %p129 = por %p127, %p128
      %p130 = scmp.ne.s32.totalorder %s118, %s119
      %p131 = scmp.eq.s32.totalorder %s25, 1
      %p132 = por %p130, %p131
      %p134 = scmp.ne.s32.totalorder %s119, %s133
      %p135 = scmp.eq.s32.totalorder %s25, 0
      %p136 = por %p134, %p135
      %s138 = sadd.s32 %s137, 1
      %p141 = scmp.eq.s32.totalorder %s19, 1
      %p142 = scmp.ne.s32.totalorder %s137, %s139
      %p143 = scmp.eq.s32.totalorder %s19, 0
      %p144 = por %p142, %p143
      %p145 = scmp.ne.s32.totalorder %s137, %s139
      %p146 = scmp.eq.s32.totalorder %s24, 1
      %p147 = por %p145, %p146
      %p148 = scmp.ne.s32.totalorder %s139, %s140
      %p149 = scmp.eq.s32.totalorder %s24, 0
      %p150 = por %p148, %p149
      %p151 = scmp.ne.s32.totalorder %s139, %s140
      %p152 = scmp.eq.s32.totalorder %s25, 1
      %p153 = por %p151, %p152
      %p155 = scmp.ne.s32.totalorder %s140, %s154
      %p156 = scmp.eq.s32.totalorder %s25, 0
      %p157 = por %p155, %p156
      %s158 = ssub.s32 %s19, %s26
      %p159 = scmp.eq.s32.totalorder %s158, 0
      %s161 = sadd.s32 %s160, 1
      %s162 = scalar_select %p159, %s160, %s161
      %p165 = pneg %p159
      %p166 = scmp.eq.s32.totalorder %s19, 1
      %p167 = por %p165, %p166
      %p168 = scmp.ne.s32.totalorder %s160, %s163
      %p169 = scmp.eq.s32.totalorder %s19, 0
      %p170 = por %p168, %p169
      %p171 = scmp.ne.s32.totalorder %s160, %s163
      %p172 = scmp.eq.s32.totalorder %s24, 1
      %p173 = por %p171, %p172
      %p174 = scmp.ne.s32.totalorder %s163, %s164
      %p175 = scmp.eq.s32.totalorder %s24, 0
      %p176 = por %p174, %p175
      %p177 = scmp.ne.s32.totalorder %s163, %s164
      %p178 = scmp.eq.s32.totalorder %s25, 1
      %p179 = por %p177, %p178
      %p181 = scmp.ne.s32.totalorder %s164, %s180
      %p182 = scmp.eq.s32.totalorder %s25, 0
      %p183 = por %p181, %p182
      %s185 = sadd.s32 %s184, 1
      %p188 = scmp.eq.s32.totalorder %s19, 1
      %p189 = scmp.ne.s32.totalorder %s184, %s186
      %p190 = scmp.eq.s32.totalorder %s19, 0
      %p191 = por %p189, %p190
      %p192 = scmp.ne.s32.totalorder %s184, %s186
      %p193 = scmp.eq.s32.totalorder %s24, 1
      %p194 = por %p192, %p193
      %p195 = scmp.ne.s32.totalorder %s186, %s187
      %p196 = scmp.eq.s32.totalorder %s24, 0
      %p197 = por %p195, %p196
      %p198 = scmp.ne.s32.totalorder %s186, %s187
      %p199 = scmp.eq.s32.totalorder %s25, 1
      %p200 = por %p198, %p199
      %p202 = scmp.ne.s32.totalorder %s187, %s201
      %p203 = scmp.eq.s32.totalorder %s25, 0
      %p204 = por %p202, %p203
      %s206 = sadd.s32 %s205, 1
      %p209 = scmp.eq.s32.totalorder %s19, 1
      %p210 = scmp.ne.s32.totalorder %s205, %s207
      %p211 = scmp.eq.s32.totalorder %s19, 0
      %p212 = por %p210, %p211
      %p213 = scmp.ne.s32.totalorder %s205, %s207
      %p214 = scmp.eq.s32.totalorder %s24, 1
      %p215 = por %p213, %p214
      %p216 = scmp.ne.s32.totalorder %s207, %s208
      %p217 = scmp.eq.s32.totalorder %s24, 0
      %p218 = por %p216, %p217
      %p219 = scmp.ne.s32.totalorder %s207, %s208
      %p220 = scmp.eq.s32.totalorder %s25, 1
      %p221 = por %p219, %p220
      %p223 = scmp.ne.s32.totalorder %s208, %s222
      %p224 = scmp.eq.s32.totalorder %s25, 0
      %p225 = por %p223, %p224
      %p226 = scmp.le.s32.totalorder 1, %s19
      %p227 = scmp.lt.s32.totalorder %s19, 3
      %p228 = pnand %p226, %p227
      %p229 = pneg %p228
      // Predicated region
      $region9: #{tpu_custom_call.1} parent=5 // pred_check
        _
      $region10: #{tpu_custom_call.1} parent=5 // pred_check_branch
        %231 = sbr.rel (%p228) target = $region12
      $region11: #{tpu_custom_call.1} parent=5 // pred_region
        %s232 = ssub.s32 %s19, 1
        // Predicated region
        $region13: #{tpu_custom_call.1} parent=11 // pred_check
          %p233 = pneg %p66
        $region14: #{tpu_custom_call.1} parent=11 // pred_check_branch
          %235 = sbr.rel (%p233) target = $region16
        $region15: #{tpu_custom_call.1} parent=11 // pred_region
          _
        $region16: #{tpu_custom_call.1} parent=11 // pred_fallthru
          _
        // Predicated region
        $region17: #{tpu_custom_call.1} parent=11 // pred_check
          %p236 = pneg %p87
        $region18: #{tpu_custom_call.1} parent=11 // pred_check_branch
          %238 = sbr.rel (%p236) target = $region20
        $region19: #{tpu_custom_call.1} parent=11 // pred_region
          _
        $region20: #{tpu_custom_call.1} parent=11 // pred_fallthru
          _
        // Predicated region
        $region21: #{tpu_custom_call.1} parent=11 // pred_check
          %p239 = pneg %p108
        $region22: #{tpu_custom_call.1} parent=11 // pred_check_branch
          %241 = sbr.rel (%p239) target = $region24
        $region23: #{tpu_custom_call.1} parent=11 // pred_region
          _
        $region24: #{tpu_custom_call.1} parent=11 // pred_fallthru
          _
        // Predicated region
        $region25: #{tpu_custom_call.1} parent=11 // pred_check
          %p242 = pneg %p129
        $region26: #{tpu_custom_call.1} parent=11 // pred_check_branch
          %244 = sbr.rel (%p242) target = $region28
        $region27: #{tpu_custom_call.1} parent=11 // pred_region
          _
        $region28: #{tpu_custom_call.1} parent=11 // pred_fallthru
          _
        // Predicated region
        $region29: #{tpu_custom_call.1} parent=11 // pred_check
          %p245 = pneg %p150
        $region30: #{tpu_custom_call.1} parent=11 // pred_check_branch
          %247 = sbr.rel (%p245) target = $region32
        $region31: #{tpu_custom_call.1} parent=11 // pred_region
          _
        $region32: #{tpu_custom_call.1} parent=11 // pred_fallthru
          _
      $region12: #{tpu_custom_call.1} parent=5 // pred_fallthru
        _
      %p248 = scmp.lt.s32.totalorder %s19, 2
      // Predicated region
      $region33: #{tpu_custom_call.1} parent=5 // pred_check
        %p249 = pneg %p248
      $region34: #{tpu_custom_call.1} parent=5 // pred_check_branch
        %251 = sbr.rel (%p249) target = $region36
      $region35: #{tpu_custom_call.1} parent=5 // pred_region
        // Predicated region
        $region37: #{tpu_custom_call.1} parent=35 // pred_check
          %p252 = pneg %p39
        $region38: #{tpu_custom_call.1} parent=35 // pred_check_branch
          %254 = sbr.rel (%p252) target = $region40
        $region39: #{tpu_custom_call.1} parent=35 // pred_region
          %s255 = smul.u32 4, %s19
          %p256 = scmp.lt.s32.totalorder %s255, 7
          %s257 = scalar_select %p256, %s255, 7
          %s258 = smul.addr %s257, 4
          %s259 = scalar_lea.vmem %s0, %s258
          %s260 = smul.u32 4, %s19
        $region40: #{tpu_custom_call.1} parent=35 // pred_fallthru
          _
      $region36: #{tpu_custom_call.1} parent=5 // pred_fallthru
        _
      %p261 = scmp.le.s32.totalorder 1, %s19
      %p262 = scmp.lt.s32.totalorder %s19, 3
      %p263 = pnand %p261, %p262
      %p264 = pneg %p263
      // Predicated region
      $region41: #{tpu_custom_call.1} parent=5 // pred_check
        _
      $region42: #{tpu_custom_call.1} parent=5 // pred_check_branch
        %266 = sbr.rel (%p263) target = $region44
      $region43: #{tpu_custom_call.1} parent=5 // pred_region
        %s267 = ssub.s32 %s19, 1
        %s268 = smul.u32 4, %s24
        %p269 = scmp.lt.s32.totalorder %s268, 7
        %s270 = scalar_select %p269, %s268, 7
        %s271 = smul.addr %s270, 4
        %s272 = scalar_lea.vmem %s0, %s271
        %p273 = pneg %p45
        %p274 = pneg %p42
        %p275 = pneg %p66
        %p276 = pneg %p63
        %p277 = pneg %p87
        %p278 = pneg %p84
        %p279 = pneg %p108
        %p280 = pneg %p105
        %p281 = pneg %p129
        %p282 = pneg %p126
        %p283 = pneg %p150
        %p284 = pneg %p147
        %p285 = pneg %p176
        %p286 = pneg %p173
        %s287 = sand.u32 %s163, 1
        %s288 = scalar_lea.sflag [#allocation4], %s287
        %s289 = sand.u32 %s163, 1
        %s290 = smul.addr %s289, 32
        %s291 = scalar_lea.vmem [#allocation3], %s290
        %p292 = pneg %p197
        %p293 = pneg %p194
        %p294 = pneg %p218
        %p295 = pneg %p215
        %s296 = smul.u32 4, %s24
        %p297 = scmp.lt.s32.totalorder %s296, 7
        %s298 = scalar_select %p297, %s296, 7
        %s299 = smul.addr %s298, 4
        %s300 = scalar_lea.vmem %s0, %s299
        %s301 = smul.u32 4, %s24
        %s302 = smul.u32 4, %s24
        %p304 = scmp.eq.s32.totalorder %s24, 0
        // Predicated region
        $region45: #{tpu_custom_call.1} parent=43 // pred_check
          %p305 = pneg %p304
        $region46: #{tpu_custom_call.1} parent=43 // pred_check_branch
          %307 = sbr.rel (%p305) target = $region48
        $region47: #{tpu_custom_call.1} parent=43 // pred_region
          %v308 = vld [vmem:[%s4] sm:$0xff]
          %vm309 = vcmask 261120
          %310 = vst.msk [vmem:[#allocation5] sm:$0xff] %vm309, %v308
          %v311 = vld [vmem:[%s5] sm:$0xff]
          %312 = vst.msk [vmem:[#allocation7] sm:$0xff] %vm309, %v311
        $region48: #{tpu_custom_call.1} parent=43 // pred_fallthru
          _
        %v313 = vld [vmem:[%s300] sm:$0xf]
        %v314 = vld [vmem:[%s300 + $0x4] sm:$0xf]
        %v315 = vld [vmem:[%s300 + $0x8] sm:$0xf]
        %v316 = vld [vmem:[%s300 + $0xc] sm:$0xf]
        %v317 = vld [vmem:[%s1] sm:$0xf]
        %v318 = vld [vmem:[%s1 + $0x4] sm:$0xf]
        %v319 = vld [vmem:[%s1 + $0x8] sm:$0xf]
        %v320 = vld [vmem:[%s1 + $0xc] sm:$0xf]
        %v321 = vld [vmem:[%s3] sm:$0x1]
        %v323 = vlaneseq
        %v324 = vshrl.u32 %v323, 7
        %v325 = vsub.s32 0, %v324
        %v326 = vrot.slane %v321, %v325
        %v332 = vunpack.c.l.b16 %v313
        %v333 = vunpack.c.l.b16 %v314
        %v334 = vunpack.c.l.b16 %v315
        %v335 = vunpack.c.l.b16 %v316
        %v336 = vpack.c.b16 %v333, %v332
        %v337 = vpack.c.b16 %v335, %v334
        %v342 = vunpack.c.l.b16 %v317
        %v343 = vunpack.c.l.b16 %v318
        %v344 = vunpack.c.l.b16 %v319
        %v345 = vunpack.c.l.b16 %v320
        %v346 = vpack.c.b16 %v343, %v342
        %v347 = vpack.c.b16 %v345, %v344
        %vm350 = vcmask 261120
        %v352 = vsel %vm350, %v336, 0
        %v355 = vsel %vm350, %v337, 0
        %357 = vmatprep.subr.bf16.mxu0 0
        %358 = vmatpush1.bf16.msra.mxu0 %v346
        %359 = vmatprep.subr.bf16.mxu0 0
        %360 = vmatpush1.bf16.msra.mxu0 %v347
        %361 = vmatprep.subr.bf16.mxu0 0
        %362 = vmatpush1.bf16.msra.mxu0 0
        %363 = vmatprep.subr.bf16.mxu0 0
        %364 = vmatpush1.bf16.msra.mxu0 0
        %365 = vmatprep.subr.bf16.mxu0 0
        %366 = vmatpush1.bf16.msra.mxu0 0
        %367 = vmatprep.subr.bf16.mxu0 0
        %368 = vmatpush1.bf16.msra.mxu0 0
        %369 = vmatprep.subr.bf16.mxu0 0
        %370 = vmatpush1.bf16.msra.mxu0 0
        %371 = vmatprep.subr.bf16.mxu0 0
        %372 = vmatpush1.bf16.msra.mxu0 0
        %373 = vmatprep.subr.bf16.mxu0 0
        %374 = vmatpush1.bf16.msra.mxu0 0
        %375 = vmatprep.subr.bf16.mxu0 0
        %376 = vmatpush1.bf16.msra.mxu0 0
        %377 = vmatprep.subr.bf16.mxu0 0
        %378 = vmatpush1.bf16.msra.mxu0 0
        %379 = vmatprep.subr.bf16.mxu0 0
        %380 = vmatpush1.bf16.msra.mxu0 0
        %381 = vmatprep.subr.bf16.mxu0 0
        %382 = vmatpush1.bf16.msra.mxu0 0
        %383 = vmatprep.subr.bf16.mxu0 0
        %384 = vmatpush1.bf16.msra.mxu0 0
        %385 = vmatprep.subr.bf16.mxu0 0
        %386 = vmatpush1.bf16.msra.mxu0 0
        %387 = vmatprep.subr.bf16.mxu0 0
        %388 = vmatpush1.bf16.msra.mxu0 0
        %389 = vmatprep.mubr.bf16.mxu0 0
        %390 = vmatmul.mubr.bf16.gmra.mrb[0].mxu0 %v352
        %v391 = vpop.f32.mrb[0].mxu0
        %v392 = vadd.f32 %v326, %v391
        %v393 = vpop.f32.mrb[0].mxu0
        %v394 = vpop.f32.mrb[0].mxu0
        %v395 = vadd.f32 %v326, %v394
        %v396 = vpop.f32.mrb[0].mxu0
        %397 = vmatprep.mubr.bf16.mxu0 0
        %398 = vmatmul.mubr.bf16.gmra.mrb[0].mxu0 %v355
        %v399 = vpop.f32.mrb[0].mxu0
        %v400 = vadd.f32 %v326, %v399
        %v401 = vpop.f32.mrb[0].mxu0
        %v402 = vpop.f32.mrb[0].mxu0
        %v403 = vadd.f32 %v326, %v402
        %v404 = vpop.f32.mrb[0].mxu0
        %405 = vdwg.mxu0
        %406 = vst [vmem:[#allocation2] sm:$0xff] %v392
        %407 = vst [vmem:[#allocation2 + $0x8] sm:$0xff] %v395
        %408 = vst [vmem:[#allocation2 + $0x10] sm:$0xff] %v400
        %409 = vst [vmem:[#allocation2 + $0x18] sm:$0xff] %v403
        %v410 = vld [vmem:[%s2] sm:$0xff]
        %v411 = vld [vmem:[%s2 + $0x8] sm:$0xff]
        %v412 = vld [vmem:[%s2 + $0x10] sm:$0xff]
        %v413 = vld [vmem:[%s2 + $0x18] sm:$0xff]
        %v414 = vld [vmem:[#allocation5] sm:$0xff]
        %v415 = vld [vmem:[#allocation7] sm:$0xff]
        %v416 = vld [vmem:[#allocation2] sm:$0xff]
        %v418 = vsel %vm350, %v414, 0
        %420 = vmatprep.subr.mxu0 0.0
        %421 = vmatpush1.msra.mxu0 %v410
        %422 = vmatprep.subr.mxu0 0.0
        %423 = vmatpush1.msra.mxu0 %v411
        %424 = vmatprep.subr.mxu0 0.0
        %425 = vmatpush1.msra.mxu0 %v412
        %426 = vmatprep.subr.mxu0 0.0
        %427 = vmatpush1.msra.mxu0 %v413
        %428 = vmatprep.subr.mxu0 0.0
        %429 = vmatpush1.msra.mxu0 0.0
        %430 = vmatprep.subr.mxu0 0.0
        %431 = vmatpush1.msra.mxu0 0.0
        %432 = vmatprep.subr.mxu0 0.0
        %433 = vmatpush1.msra.mxu0 0.0
        %434 = vmatprep.subr.mxu0 0.0
        %435 = vmatpush1.msra.mxu0 0.0
        %436 = vmatprep.subr.mxu0 0.0
        %437 = vmatpush1.msra.mxu0 0.0
        %438 = vmatprep.subr.mxu0 0.0
        %439 = vmatpush1.msra.mxu0 0.0
        %440 = vmatprep.subr.mxu0 0.0
        %441 = vmatpush1.msra.mxu0 0.0
        %442 = vmatprep.subr.mxu0 0.0
        %443 = vmatpush1.msra.mxu0 0.0
        %444 = vmatprep.subr.mxu0 0.0
        %445 = vmatpush1.msra.mxu0 0.0
        %446 = vmatprep.subr.mxu0 0.0
        %447 = vmatpush1.msra.mxu0 0.0
        %448 = vmatprep.subr.mxu0 0.0
        %449 = vmatpush1.msra.mxu0 0.0
        %450 = vmatprep.subr.mxu0 0.0
        %451 = vmatpush1.msra.mxu0 0.0
        %452 = vmatprep.subr.mxu0 0.0
        %453 = vmatpush1.msra.mxu0 0.0
        %454 = vmatprep.subr.mxu0 0.0
        %455 = vmatpush1.msra.mxu0 0.0
        %456 = vmatprep.subr.mxu0 0.0
        %457 = vmatpush1.msra.mxu0 0.0
        %458 = vmatprep.subr.mxu0 0.0
        %459 = vmatpush1.msra.mxu0 0.0
        %460 = vmatprep.subr.mxu0 0.0
        %461 = vmatpush1.msra.mxu0 0.0
        %462 = vmatprep.subr.mxu0 0.0
        %463 = vmatpush1.msra.mxu0 0.0
        %464 = vmatprep.subr.mxu0 0.0
        %465 = vmatpush1.msra.mxu0 0.0
        %466 = vmatprep.subr.mxu0 0.0
        %467 = vmatpush1.msra.mxu0 0.0
        %468 = vmatprep.subr.mxu0 0.0
        %469 = vmatpush1.msra.mxu0 0.0
        %470 = vmatprep.subr.mxu0 0.0
        %471 = vmatpush1.msra.mxu0 0.0
        %472 = vmatprep.subr.mxu0 0.0
        %473 = vmatpush1.msra.mxu0 0.0
        %474 = vmatprep.subr.mxu0 0.0
        %475 = vmatpush1.msra.mxu0 0.0
        %476 = vmatprep.subr.mxu0 0.0
        %477 = vmatpush1.msra.mxu0 0.0
        %478 = vmatprep.subr.mxu0 0.0
        %479 = vmatpush1.msra.mxu0 0.0
        %480 = vmatprep.subr.mxu0 0.0
        %481 = vmatpush1.msra.mxu0 0.0
        %482 = vmatprep.subr.mxu0 0.0
        %483 = vmatpush1.msra.mxu0 0.0
        %484 = vmatprep.mubr.f32.mxu0 0.0
        %485 = vmatmul.mubr.f32.gmra.mrb[0].mxu0 %v418
        %v486 = vpop.f32.mrb[0].mxu0
        %v487 = vadd.f32 0.0, %v486
        %v488 = vpop.f32.mrb[0].mxu0
        %489 = vdwg.mxu0
        %v490 = vadd.f32 %v416, %v487
        %v491 = vxor.u32 %v490, 2147483648
        %v492 = vmul.f32 %v491, 1.442695
        %v493 = vpow.pop %v492
        %v494 = vadd.f32 %v493, 1.0
        %v495 = vrcp.pop %v494
        %v496 = vmul.f32 1.0, %v495
        %v497 = vtanh.pop %v490
        %499 = vrot.lane.b32.xlu0 %v415, 32
        %v500 = vpop.permute.xlu0 %499
        %v502 = vmul.f32 %v496, %v500
        %504 = vrot.lane.b32.xlu0 %v497, 64
        %v505 = vpop.permute.xlu0 %504
        %v507 = vmul.f32 %v496, %v505
        %509 = vrot.lane.b32.xlu0 %v507, 32
        %v510 = vpop.permute.xlu0 %509
        %v512 = vadd.f32 %v502, %v510
        %v513 = vtanh.pop %v512
        %515 = vrot.lane.b32.xlu0 %v513, 64
        %v516 = vpop.permute.xlu0 %515
        %v518 = vmul.f32 %v496, %v516
        %520 = vrot.lane.b32.xlu0 %v518, 32
        %v521 = vpop.permute.xlu0 %520
        %523 = vst.msk [vmem:[%s291] sm:$0xff] %vm350, %v521
        %s524 = scalar_lea.vmem [#allocation2], 8
        %v525 = vld [vmem:[%s524] sm:$0xff]
        %v526 = vsel %vm350, %v521, 0
        %528 = vmatprep.subr.mxu0 0.0
        %529 = vmatpush1.msra.mxu0 %v410
        %530 = vmatprep.subr.mxu0 0.0
        %531 = vmatpush1.msra.mxu0 %v411
        %532 = vmatprep.subr.mxu0 0.0
        %533 = vmatpush1.msra.mxu0 %v412
        %534 = vmatprep.subr.mxu0 0.0
        %535 = vmatpush1.msra.mxu0 %v413
        %536 = vmatprep.subr.mxu0 0.0
        %537 = vmatpush1.msra.mxu0 0.0
        %538 = vmatprep.subr.mxu0 0.0
        %539 = vmatpush1.msra.mxu0 0.0
        %540 = vmatprep.subr.mxu0 0.0
        %541 = vmatpush1.msra.mxu0 0.0
        %542 = vmatprep.subr.mxu0 0.0
        %543 = vmatpush1.msra.mxu0 0.0
        %544 = vmatprep.subr.mxu0 0.0
        %545 = vmatpush1.msra.mxu0 0.0
        %546 = vmatprep.subr.mxu0 0.0
        %547 = vmatpush1.msra.mxu0 0.0
        %548 = vmatprep.subr.mxu0 0.0
        %549 = vmatpush1.msra.mxu0 0.0
        %550 = vmatprep.subr.mxu0 0.0
        %551 = vmatpush1.msra.mxu0 0.0
        %552 = vmatprep.subr.mxu0 0.0
        %553 = vmatpush1.msra.mxu0 0.0
        %554 = vmatprep.subr.mxu0 0.0
        %555 = vmatpush1.msra.mxu0 0.0
        %556 = vmatprep.subr.mxu0 0.0
        %557 = vmatpush1.msra.mxu0 0.0
        %558 = vmatprep.subr.mxu0 0.0
        %559 = vmatpush1.msra.mxu0 0.0
        %560 = vmatprep.subr.mxu0 0.0
        %561 = vmatpush1.msra.mxu0 0.0
        %562 = vmatprep.subr.mxu0 0.0
        %563 = vmatpush1.msra.mxu0 0.0
        %564 = vmatprep.subr.mxu0 0.0
        %565 = vmatpush1.msra.mxu0 0.0
        %566 = vmatprep.subr.mxu0 0.0
        %567 = vmatpush1.msra.mxu0 0.0
        %568 = vmatprep.subr.mxu0 0.0
        %569 = vmatpush1.msra.mxu0 0.0
        %570 = vmatprep.subr.mxu0 0.0
        %571 = vmatpush1.msra.mxu0 0.0
        %572 = vmatprep.subr.mxu0 0.0
        %573 = vmatpush1.msra.mxu0 0.0
        %574 = vmatprep.subr.mxu0 0.0
        %575 = vmatpush1.msra.mxu0 0.0
        %576 = vmatprep.subr.mxu0 0.0
        %577 = vmatpush1.msra.mxu0 0.0
        %578 = vmatprep.subr.mxu0 0.0
        %579 = vmatpush1.msra.mxu0 0.0
        %580 = vmatprep.subr.mxu0 0.0
        %581 = vmatpush1.msra.mxu0 0.0
        %582 = vmatprep.subr.mxu0 0.0
        %583 = vmatpush1.msra.mxu0 0.0
        %584 = vmatprep.subr.mxu0 0.0
        %585 = vmatpush1.msra.mxu0 0.0
        %586 = vmatprep.subr.mxu0 0.0
        %587 = vmatpush1.msra.mxu0 0.0
        %588 = vmatprep.subr.mxu0 0.0
        %589 = vmatpush1.msra.mxu0 0.0
        %590 = vmatprep.subr.mxu0 0.0
        %591 = vmatpush1.msra.mxu0 0.0
        %592 = vmatprep.mubr.f32.mxu0 0.0
        %593 = vmatmul.mubr.f32.gmra.mrb[0].mxu0 %v526
        %v594 = vpop.f32.mrb[0].mxu0
        %v595 = vadd.f32 0.0, %v594
        %v596 = vpop.f32.mrb[0].mxu0
        %597 = vdwg.mxu0
        %v598 = vadd.f32 %v525, %v595
        %v599 = vxor.u32 %v598, 2147483648
        %v600 = vmul.f32 %v599, 1.442695
        %v601 = vpow.pop %v600
        %v602 = vadd.f32 %v601, 1.0
        %v603 = vrcp.pop %v602
        %v604 = vmul.f32 1.0, %v603
        %v605 = vtanh.pop %v598
        %v606 = vmul.f32 %v604, %v512
        %608 = vrot.lane.b32.xlu0 %v605, 64
        %v609 = vpop.permute.xlu0 %608
        %v611 = vmul.f32 %v604, %v609
        %613 = vrot.lane.b32.xlu0 %v611, 32
        %v614 = vpop.permute.xlu0 %613
        %v616 = vadd.f32 %v606, %v614
        %v617 = vtanh.pop %v616
        %619 = vrot.lane.b32.xlu0 %v617, 64
        %v620 = vpop.permute.xlu0 %619
        %v622 = vmul.f32 %v604, %v620
        %624 = vrot.lane.b32.xlu0 %v622, 32
        %v625 = vpop.permute.xlu0 %624
        %s627 = scalar_lea.vmem %s291, 8 [#allocation3]
        %628 = vst.msk [vmem:[%s627] sm:$0xff] %vm350, %v625
        %s629 = scalar_lea.vmem [#allocation2], 16
        %v630 = vld [vmem:[%s629] sm:$0xff]
        %v631 = vsel %vm350, %v625, 0
        %633 = vmatprep.subr.mxu0 0.0
        %634 = vmatpush1.msra.mxu0 %v410
        %635 = vmatprep.subr.mxu0 0.0
        %636 = vmatpush1.msra.mxu0 %v411
        %637 = vmatprep.subr.mxu0 0.0
        %638 = vmatpush1.msra.mxu0 %v412
        %639 = vmatprep.subr.mxu0 0.0
        %640 = vmatpush1.msra.mxu0 %v413
        %641 = vmatprep.subr.mxu0 0.0
        %642 = vmatpush1.msra.mxu0 0.0
        %643 = vmatprep.subr.mxu0 0.0
        %644 = vmatpush1.msra.mxu0 0.0
        %645 = vmatprep.subr.mxu0 0.0
        %646 = vmatpush1.msra.mxu0 0.0
        %647 = vmatprep.subr.mxu0 0.0
        %648 = vmatpush1.msra.mxu0 0.0
        %649 = vmatprep.subr.mxu0 0.0
        %650 = vmatpush1.msra.mxu0 0.0
        %651 = vmatprep.subr.mxu0 0.0
        %652 = vmatpush1.msra.mxu0 0.0
        %653 = vmatprep.subr.mxu0 0.0
        %654 = vmatpush1.msra.mxu0 0.0
        %655 = vmatprep.subr.mxu0 0.0
        %656 = vmatpush1.msra.mxu0 0.0
        %657 = vmatprep.subr.mxu0 0.0
        %658 = vmatpush1.msra.mxu0 0.0
        %659 = vmatprep.subr.mxu0 0.0
        %660 = vmatpush1.msra.mxu0 0.0
        %661 = vmatprep.subr.mxu0 0.0
        %662 = vmatpush1.msra.mxu0 0.0
        %663 = vmatprep.subr.mxu0 0.0
        %664 = vmatpush1.msra.mxu0 0.0
        %665 = vmatprep.subr.mxu0 0.0
        %666 = vmatpush1.msra.mxu0 0.0
        %667 = vmatprep.subr.mxu0 0.0
        %668 = vmatpush1.msra.mxu0 0.0
        %669 = vmatprep.subr.mxu0 0.0
        %670 = vmatpush1.msra.mxu0 0.0
        %671 = vmatprep.subr.mxu0 0.0
        %672 = vmatpush1.msra.mxu0 0.0
        %673 = vmatprep.subr.mxu0 0.0
        %674 = vmatpush1.msra.mxu0 0.0
        %675 = vmatprep.subr.mxu0 0.0
        %676 = vmatpush1.msra.mxu0 0.0
        %677 = vmatprep.subr.mxu0 0.0
        %678 = vmatpush1.msra.mxu0 0.0
        %679 = vmatprep.subr.mxu0 0.0
        %680 = vmatpush1.msra.mxu0 0.0
        %681 = vmatprep.subr.mxu0 0.0
        %682 = vmatpush1.msra.mxu0 0.0
        %683 = vmatprep.subr.mxu0 0.0
        %684 = vmatpush1.msra.mxu0 0.0
        %685 = vmatprep.subr.mxu0 0.0
        %686 = vmatpush1.msra.mxu0 0.0
        %687 = vmatprep.subr.mxu0 0.0
        %688 = vmatpush1.msra.mxu0 0.0
        %689 = vmatprep.subr.mxu0 0.0
        %690 = vmatpush1.msra.mxu0 0.0
        %691 = vmatprep.subr.mxu0 0.0
        %692 = vmatpush1.msra.mxu0 0.0
        %693 = vmatprep.subr.mxu0 0.0
        %694 = vmatpush1.msra.mxu0 0.0
        %695 = vmatprep.subr.mxu0 0.0
        %696 = vmatpush1.msra.mxu0 0.0
        %697 = vmatprep.mubr.f32.mxu0 0.0
        %698 = vmatmul.mubr.f32.gmra.mrb[0].mxu0 %v631
        %v699 = vpop.f32.mrb[0].mxu0
        %v700 = vadd.f32 0.0, %v699
        %v701 = vpop.f32.mrb[0].mxu0
        %702 = vdwg.mxu0
        %v703 = vadd.f32 %v630, %v700
        %v704 = vxor.u32 %v703, 2147483648
        %v705 = vmul.f32 %v704, 1.442695
        %v706 = vpow.pop %v705
        %v707 = vadd.f32 %v706, 1.0
        %v708 = vrcp.pop %v707
        %v709 = vmul.f32 1.0, %v708
        %v710 = vtanh.pop %v703
        %v711 = vmul.f32 %v709, %v616
        %713 = vrot.lane.b32.xlu0 %v710, 64
        %v714 = vpop.permute.xlu0 %713
        %v716 = vmul.f32 %v709, %v714
        %718 = vrot.lane.b32.xlu0 %v716, 32
        %v719 = vpop.permute.xlu0 %718
        %v721 = vadd.f32 %v711, %v719
        %v722 = vtanh.pop %v721
        %724 = vrot.lane.b32.xlu0 %v722, 64
        %v725 = vpop.permute.xlu0 %724
        %v727 = vmul.f32 %v709, %v725
        %729 = vrot.lane.b32.xlu0 %v727, 32
        %v730 = vpop.permute.xlu0 %729
        %s732 = scalar_lea.vmem %s291, 16 [#allocation3]
        %733 = vst.msk [vmem:[%s732] sm:$0xff] %vm350, %v730
        %s734 = scalar_lea.vmem [#allocation2], 24
        %v735 = vld [vmem:[%s734] sm:$0xff]
        %v736 = vsel %vm350, %v730, 0
        %738 = vmatprep.subr.mxu0 0.0
        %739 = vmatpush1.msra.mxu0 %v410
        %740 = vmatprep.subr.mxu0 0.0
        %741 = vmatpush1.msra.mxu0 %v411
        %742 = vmatprep.subr.mxu0 0.0
        %743 = vmatpush1.msra.mxu0 %v412
        %744 = vmatprep.subr.mxu0 0.0
        %745 = vmatpush1.msra.mxu0 %v413
        %746 = vmatprep.subr.mxu0 0.0
        %747 = vmatpush1.msra.mxu0 0.0
        %748 = vmatprep.subr.mxu0 0.0
        %749 = vmatpush1.msra.mxu0 0.0
        %750 = vmatprep.subr.mxu0 0.0
        %751 = vmatpush1.msra.mxu0 0.0
        %752 = vmatprep.subr.mxu0 0.0
        %753 = vmatpush1.msra.mxu0 0.0
        %754 = vmatprep.subr.mxu0 0.0
        %755 = vmatpush1.msra.mxu0 0.0
        %756 = vmatprep.subr.mxu0 0.0
        %757 = vmatpush1.msra.mxu0 0.0
        %758 = vmatprep.subr.mxu0 0.0
        %759 = vmatpush1.msra.mxu0 0.0
        %760 = vmatprep.subr.mxu0 0.0
        %761 = vmatpush1.msra.mxu0 0.0
        %762 = vmatprep.subr.mxu0 0.0
        %763 = vmatpush1.msra.mxu0 0.0
        %764 = vmatprep.subr.mxu0 0.0
        %765 = vmatpush1.msra.mxu0 0.0
        %766 = vmatprep.subr.mxu0 0.0
        %767 = vmatpush1.msra.mxu0 0.0
        %768 = vmatprep.subr.mxu0 0.0
        %769 = vmatpush1.msra.mxu0 0.0
        %770 = vmatprep.subr.mxu0 0.0
        %771 = vmatpush1.msra.mxu0 0.0
        %772 = vmatprep.subr.mxu0 0.0
        %773 = vmatpush1.msra.mxu0 0.0
        %774 = vmatprep.subr.mxu0 0.0
        %775 = vmatpush1.msra.mxu0 0.0
        %776 = vmatprep.subr.mxu0 0.0
        %777 = vmatpush1.msra.mxu0 0.0
        %778 = vmatprep.subr.mxu0 0.0
        %779 = vmatpush1.msra.mxu0 0.0
        %780 = vmatprep.subr.mxu0 0.0
        %781 = vmatpush1.msra.mxu0 0.0
        %782 = vmatprep.subr.mxu0 0.0
        %783 = vmatpush1.msra.mxu0 0.0
        %784 = vmatprep.subr.mxu0 0.0
        %785 = vmatpush1.msra.mxu0 0.0
        %786 = vmatprep.subr.mxu0 0.0
        %787 = vmatpush1.msra.mxu0 0.0
        %788 = vmatprep.subr.mxu0 0.0
        %789 = vmatpush1.msra.mxu0 0.0
        %790 = vmatprep.subr.mxu0 0.0
        %791 = vmatpush1.msra.mxu0 0.0
        %792 = vmatprep.subr.mxu0 0.0
        %793 = vmatpush1.msra.mxu0 0.0
        %794 = vmatprep.subr.mxu0 0.0
        %795 = vmatpush1.msra.mxu0 0.0
        %796 = vmatprep.subr.mxu0 0.0
        %797 = vmatpush1.msra.mxu0 0.0
        %798 = vmatprep.subr.mxu0 0.0
        %799 = vmatpush1.msra.mxu0 0.0
        %800 = vmatprep.subr.mxu0 0.0
        %801 = vmatpush1.msra.mxu0 0.0
        %802 = vmatprep.mubr.f32.mxu0 0.0
        %803 = vmatmul.mubr.f32.gmra.mrb[0].mxu0 %v736
        %v804 = vpop.f32.mrb[0].mxu0
        %v805 = vadd.f32 0.0, %v804
        %v806 = vpop.f32.mrb[0].mxu0
        %807 = vdwg.mxu0
        %v808 = vadd.f32 %v735, %v805
        %v809 = vxor.u32 %v808, 2147483648
        %v810 = vmul.f32 %v809, 1.442695
        %v811 = vpow.pop %v810
        %v812 = vadd.f32 %v811, 1.0
        %v813 = vrcp.pop %v812
        %v814 = vmul.f32 1.0, %v813
        %v815 = vtanh.pop %v808
        %v816 = vmul.f32 %v814, %v721
        %818 = vrot.lane.b32.xlu0 %v815, 64
        %v819 = vpop.permute.xlu0 %818
        %v821 = vmul.f32 %v814, %v819
        %823 = vrot.lane.b32.xlu0 %v821, 32
        %v824 = vpop.permute.xlu0 %823
        %v826 = vadd.f32 %v816, %v824
        %v827 = vtanh.pop %v826
        %829 = vrot.lane.b32.xlu0 %v827, 64
        %v830 = vpop.permute.xlu0 %829
        %v832 = vmul.f32 %v814, %v830
        %834 = vrot.lane.b32.xlu0 %v832, 32
        %v835 = vpop.permute.xlu0 %834
        %s837 = scalar_lea.vmem %s291, 24 [#allocation3]
        %838 = vst.msk [vmem:[%s837] sm:$0xff] %vm350, %v835
        %839 = vst.msk [vmem:[#allocation5] sm:$0xff] %vm350, %v835
        %841 = vrot.lane.b32.xlu0 %v826, 96
        %v842 = vpop.permute.xlu0 %841
        %844 = vst.msk [vmem:[#allocation7] sm:$0xff] %vm350, %v842
        %s845 = sand.u32 %s163, 1
        %s846 = scalar_lea.sflag [#allocation4], %s845
        %s847 = sand.u32 %s163, 1
        %s848 = smul.addr %s847, 32
        %s849 = scalar_lea.vmem [#allocation3], %s848
        // Predicated region
        $region49: #{tpu_custom_call.1} parent=43 // pred_check
          %p850 = pneg %p173
        $region50: #{tpu_custom_call.1} parent=43 // pred_check_branch
          %852 = sbr.rel (%p850) target = $region52
        $region51: #{tpu_custom_call.1} parent=43 // pred_region
          %s853 = smul.u32 4, %s24
          %s855 = ssub.s32 512, 512
          %856 = vsyncadd %s846, %s855
          %s857 = smul.addr %s853, 128
          %s858 = scalar_lea.hbm %s6, %s857
          %s859 = sshll.u32 %s849, 4
          %s860 = int_to_ptr.vmem [resolvable:$true] %s859
          %865 = dma.vmem_to_hbm [thread:$0]  %s860, 512, %s858, %s846, 128, 128, 8
        $region52: #{tpu_custom_call.1} parent=43 // pred_fallthru
          _
        // Predicated region
        $region53: #{tpu_custom_call.1} parent=43 // pred_check
          %p866 = pneg %p194
        $region54: #{tpu_custom_call.1} parent=43 // pred_check_branch
          %868 = sbr.rel (%p866) target = $region56
        $region55: #{tpu_custom_call.1} parent=43 // pred_region
          %s870 = ssub.s32 128, 128
          %871 = vsyncadd [#allocation6], %s870
          %s873 = sshll.u32 [#allocation5], 4
          %s874 = int_to_ptr.vmem [resolvable:$true] %s873
          %876 = dma.vmem_to_hbm [thread:$0]  %s874, 128, %s7, [#allocation6]
        $region56: #{tpu_custom_call.1} parent=43 // pred_fallthru
          _
        // Predicated region
        $region57: #{tpu_custom_call.1} parent=43 // pred_check
          %p877 = pneg %p215
        $region58: #{tpu_custom_call.1} parent=43 // pred_check_branch
          %879 = sbr.rel (%p877) target = $region60
        $region59: #{tpu_custom_call.1} parent=43 // pred_region
          %s881 = ssub.s32 128, 128
          %882 = vsyncadd [#allocation6], %s881
          %s884 = sshll.u32 [#allocation7], 4
          %s885 = int_to_ptr.vmem [resolvable:$true] %s884
          %887 = dma.vmem_to_hbm [thread:$0]  %s885, 128, %s8, [#allocation6]
        $region60: #{tpu_custom_call.1} parent=43 // pred_fallthru
          _
        // Predicated region
        $region61: #{tpu_custom_call.1} parent=43 // pred_check
          %p888 = pneg %p194
        $region62: #{tpu_custom_call.1} parent=43 // pred_check_branch
          %890 = sbr.rel (%p888) target = $region64
        $region63: #{tpu_custom_call.1} parent=43 // pred_region
          %891 = dma.done [#allocation6], 128
        $region64: #{tpu_custom_call.1} parent=43 // pred_fallthru
          _
        // Predicated region
        $region65: #{tpu_custom_call.1} parent=43 // pred_check
          %p892 = pneg %p215
        $region66: #{tpu_custom_call.1} parent=43 // pred_check_branch
          %894 = sbr.rel (%p892) target = $region68
        $region67: #{tpu_custom_call.1} parent=43 // pred_region
          %895 = dma.done [#allocation6], 128
        $region68: #{tpu_custom_call.1} parent=43 // pred_fallthru
          _
      $region44: #{tpu_custom_call.1} parent=5 // pred_fallthru
        _
      %p896 = scmp.le.s32.totalorder 2, %s19
      // Predicated region
      $region69: #{tpu_custom_call.1} parent=5 // pred_check
        %p897 = pneg %p896
      $region70: #{tpu_custom_call.1} parent=5 // pred_check_branch
        %899 = sbr.rel (%p897) target = $region72
      $region71: #{tpu_custom_call.1} parent=5 // pred_region
        %s900 = ssub.s32 %s19, 2
        // Predicated region
        $region73: #{tpu_custom_call.1} parent=71 // pred_check
          %p901 = pneg %p179
        $region74: #{tpu_custom_call.1} parent=71 // pred_check_branch
          %903 = sbr.rel (%p901) target = $region76
        $region75: #{tpu_custom_call.1} parent=71 // pred_region
          %s904 = sand.u32 %s164, 1
          %s905 = scalar_lea.sflag [#allocation4], %s904
          %s906 = sand.u32 %s164, 1
          %s907 = smul.addr %s906, 32
          %s908 = scalar_lea.vmem [#allocation3], %s907
          %909 = dma.done %s905, 512
        $region76: #{tpu_custom_call.1} parent=71 // pred_fallthru
          _
      $region72: #{tpu_custom_call.1} parent=5 // pred_fallthru
        _
    $region6: #{tpu_custom_call.1} parent=1 // loop_footer
      %s23 = sadd.s32 1, %s19
    $region7: #{tpu_custom_call.1} parent=1 // loop_footer_branch
      %18 = sbr.rel target = $region3
    $region8: #{tpu_custom_call.1} parent=1 // loop_exit
      _
    %910 = vsyncpa [#allocation4], 1
    %s911 = scalar_lea.sflag [#allocation4], 1
    %912 = vsyncpa %s911, 1
    %913 = vsyncpa [#allocation6], 1

</llo_original>
